<compile_context>
chip_gen: v7x
topology: tpu7x:2x2x1
jax: 0.10.0
libtpu: 0.0.40
codegen_flags: <defaults>
</compile_context>

<pallas_src>
import math

import jax
import jax.numpy as jnp
from jax import lax
from jax.experimental import pallas as pl
from jax.experimental.pallas import tpu as pltpu


# ----------------------------- budgets & tile selection ------------------------

def _vmem_budget():
    """(tile-planning budget, scoped vmem limit) derived from the chip's VMEM."""
    try:
        cap = int(pltpu.get_tpu_info().vmem_capacity_bytes)
    except Exception:
        cap = 64 * 1024 * 1024          # conservative fallback (v7x-sized)
    budget = cap // 2                   # headroom for compiler temporaries / rounding
    limit = (cap * 3) // 4              # explicit scoped limit for the compiler
    return budget, limit


def _choose_tile(n, target):
    """Pick a tile for an axis of length n.

    Returns (tile, padded_n): tile divides padded_n; tile == n when n <= target;
    otherwise the largest 8-aligned divisor of n that is <= target, or a padded
    axis (multiple of `target`) when no aligned divisor exists.
    """
    if n <= target:
        return n, n
    for align in (256, 128, 8):
        c = (target // align) * align
        while c >= align:
            if n % c == 0:
                return c, n
            c -= align
    t = max(8, (target // 8) * 8)
    return t, ((n + t - 1) // t) * t


def _choose_block_b(B, per_batch_bytes, budget_bytes):
    """Batches per grid step; keeps n_b >= 2 when possible (v7x megacore)."""
    max_bb = min(16, B)
    if B >= 2:
        max_bb = min(max_bb, max(1, B // 2))
    cap = max(1, min(max_bb, budget_bytes // max(per_batch_bytes, 1)))
    for c in range(int(cap), 0, -1):
        if B % c == 0:
            return c
    return 1


# ----------------------------------- kernels ----------------------------------

def _unmasked_body(q_ref, k_ref, v_ref, acc_ref, qs_sc):
    # Reference quirk: with valid_lens=None the softmax runs over the QUERY axis.
    # That softmax is independent per key column, so key blocks simply accumulate.
    kb = pl.program_id(1)

    @pl.when(kb == 0)
    def _init():
        scale = 1.0 / math.sqrt(q_ref.shape[-1])
        qs_sc[...] = (q_ref[...].astype(jnp.float32) * scale).astype(qs_sc.dtype)
        acc_ref[...] = jnp.zeros_like(acc_ref)

    s = jnp.einsum("bqd,bkd->bqk", qs_sc[...], k_ref[...],
                   preferred_element_type=jnp.float32)
    m = jnp.max(s, axis=1, keepdims=True)          # softmax over the query axis
    e = jnp.exp(s - m)
    w = e * pl.reciprocal(jnp.sum(e, axis=1, keepdims=True), approx=False)
    acc_ref[...] += jnp.einsum("bqk,bkv->bqv", w.astype(v_ref.dtype), v_ref[...],
                               preferred_element_type=jnp.float32)


def _unmasked_kernel_direct(q_ref, k_ref, v_ref, o_ref, qs_sc):
    # f32 output: accumulate straight into the resident output block (no scratch).
    _unmasked_body(q_ref, k_ref, v_ref, o_ref, qs_sc)


def _unmasked_kernel_scratch(q_ref, k_ref, v_ref, o_ref, qs_sc, acc_sc):
    _unmasked_body(q_ref, k_ref, v_ref, acc_sc, qs_sc)

    @pl.when(pl.program_id(1) == pl.num_programs(1) - 1)
    def _finalize():
        o_ref[...] = acc_sc[...].astype(o_ref.dtype)


def _make_masked_kernel(k_orig, k_padded):
    pad_k = (k_padded != k_orig)

    def kernel(lastblk_ref, vl_ref, q_ref, k_ref, v_ref, o_ref,
               qs_sc, m_sc, l_sc, acc_sc):
        bb = pl.program_id(0)
        qb = pl.program_id(1)
        kb = pl.program_id(2)
        n_q = pl.num_programs(1)
        n_kb = pl.num_programs(2)
        block_k = k_ref.shape[1]

        @pl.when(kb == 0)
        def _init():
            scale = 1.0 / math.sqrt(q_ref.shape[-1])
            qs_sc[...] = (q_ref[...].astype(jnp.float32) * scale).astype(qs_sc.dtype)
            m_sc[...] = jnp.full_like(m_sc, -jnp.inf)
            l_sc[...] = jnp.zeros_like(l_sc)
            acc_sc[...] = jnp.zeros_like(acc_sc)

        # Key blocks beyond the prefetched last-block index are skipped: the
        # clamped K/V index_map already suppressed their DMA, so skip compute too.
        @pl.when(kb <= lastblk_ref[bb * n_q + qb])
        def _compute():
            s = jnp.einsum("bqd,bkd->bqk", qs_sc[...], k_ref[...],
                           preferred_element_type=jnp.float32)
            col = kb * block_k + lax.broadcasted_iota(jnp.int32, (1, 1, block_k), 2)
            s = jnp.where(col < vl_ref[...], s, jnp.float32(-1.0e6))
            if pad_k:
                # padded key columns must contribute exactly zero weight even for
                # fully-masked rows (which the reference treats as uniform over K)
                s = jnp.where(col < k_orig, s, jnp.float32(-1.0e30))
            m_prev = m_sc[...]
            m_new = jnp.maximum(m_prev, jnp.max(s, axis=-1, keepdims=True))
            alpha = jnp.exp(m_prev - m_new)
            p = jnp.exp(s - m_new)
            l_sc[...] = alpha * l_sc[...] + jnp.sum(p, axis=-1, keepdims=True)
            acc_sc[...] = alpha * acc_sc[...] + jnp.einsum(
                "bqk,bkv->bqv", p.astype(v_ref.dtype), v_ref[...],
                preferred_element_type=jnp.float32)
            m_sc[...] = m_new

        @pl.when(kb == n_kb - 1)
        def _finalize():
            # Normalization deferred past the PV matmul; exact reciprocal keeps
            # the 1e-5 tolerance against the reference.
            o_ref[...] = (acc_sc[...] *
                          pl.reciprocal(l_sc[...], approx=False)).astype(o_ref.dtype)

    return kernel


# ----------------------------------- wrapper -----------------------------------

def dot_product_attention(queries, keys, values, valid_lens=None):
    queries = jnp.asarray(queries)
    keys = jnp.asarray(keys)
    values = jnp.asarray(values)
    B, Q, D = queries.shape
    _, K, Dv = values.shape
    out_dtype = queries.dtype
    itemsize = queries.dtype.itemsize

    budget, vmem_limit = _vmem_budget()

    # ------------------------- unmasked (query-axis softmax) -------------------
    if valid_lens is None:
        acc_in_out = (out_dtype == jnp.dtype(jnp.float32))

        def per_batch(bk):
            b = 2 * (Q * D + bk * D + bk * Dv + Q * Dv) * itemsize  # dbl-buffered IO
            b += Q * D * itemsize                                    # scaled-q scratch
            b += 0 if acc_in_out else 4 * Q * Dv                     # f32 accumulator
            b += 3 * 4 * Q * bk                                      # f32 s/e/w temps
            return b

        block_k, Kp = _choose_tile(K, 512)
        for tk in (512, 256, 128, 64, 32, 16, 8):
            block_k, Kp = _choose_tile(K, tk)
            if per_batch(block_k) <= budget:
                break
        # TODO(synk): extremely large Q with the query-axis softmax cannot be
        # Q-tiled (cross-Q reduction); it may still exceed the VMEM budget.
        block_b = _choose_block_b(B, per_batch(block_k), budget)

        if Kp != K:  # zero padding is exact: zero scores * zero values contribute 0
            keys = jnp.pad(keys, ((0, 0), (0, Kp - K), (0, 0)))
            values = jnp.pad(values, ((0, 0), (0, Kp - K), (0, 0)))

        n_b, n_k = B // block_b, Kp // block_k
        scratch = [pltpu.VMEM((block_b, Q, D), queries.dtype)]
        kernel = _unmasked_kernel_direct
        if not acc_in_out:
            scratch.append(pltpu.VMEM((block_b, Q, Dv), jnp.float32))
            kernel = _unmasked_kernel_scratch

        grid_spec = pltpu.PrefetchScalarGridSpec(
            num_scalar_prefetch=0,
            grid=(n_b, n_k),
            in_specs=[
                pl.BlockSpec((block_b, Q, D), lambda b, k: (b, 0, 0)),
                pl.BlockSpec((block_b, block_k, D), lambda b, k: (b, k, 0)),
                pl.BlockSpec((block_b, block_k, Dv), lambda b, k: (b, k, 0)),
            ],
            out_specs=pl.BlockSpec((block_b, Q, Dv), lambda b, k: (b, 0, 0)),
            scratch_shapes=scratch,
        )
        return pl.pallas_call(
            kernel,
            out_shape=jax.ShapeDtypeStruct((B, Q, Dv), out_dtype),
            grid_spec=grid_spec,
            compiler_params=pltpu.CompilerParams(
                dimension_semantics=("parallel", "arbitrary"),
                vmem_limit_bytes=vmem_limit),
        )(queries, keys, values)

    # ----------------- masked (key-axis softmax, flash-style streaming) --------
    valid_lens = jnp.asarray(valid_lens, jnp.int32)
    if valid_lens.ndim == 1:
        vl2d = jnp.broadcast_to(valid_lens[:, None], (B, Q))
    else:
        vl2d = valid_lens.reshape(B, Q)

    def per_batch(bq, bk):
        b = 2 * (bq * D + bk * D + bk * Dv + bq * Dv) * itemsize  # dbl-buffered IO
        b += 2 * bq * 4                                           # valid_lens block
        b += bq * D * itemsize                                    # scaled-q scratch
        b += 4 * bq * (Dv + 2)                                    # f32 acc + m + l
        b += 3 * 4 * bq * bk                                      # f32 score/prob temps
        return b

    block_q, Qp = _choose_tile(Q, 512)
    block_k, Kp = _choose_tile(K, 512)
    for tq, tk in ((512, 512), (256, 512), (256, 256), (128, 256),
                   (128, 128), (64, 128), (64, 64), (32, 32), (8, 8)):
        block_q, Qp = _choose_tile(Q, tq)
        block_k, Kp = _choose_tile(K, tk)
        if per_batch(block_q, block_k) <= budget:
            break
    block_b = _choose_block_b(B, per_batch(block_q, block_k), budget)
    n_b, n_q, n_k = B // block_b, Qp // block_q, Kp // block_k

    if Qp != Q:
        queries = jnp.pad(queries, ((0, 0), (0, Qp - Q), (0, 0)))
        vl2d = jnp.pad(vl2d, ((0, 0), (0, Qp - Q)), constant_values=1)
    if Kp != K:
        keys = jnp.pad(keys, ((0, 0), (0, Kp - K), (0, 0)))
        values = jnp.pad(values, ((0, 0), (0, Kp - K), (0, 0)))

    vl3d = vl2d[:, :, None]                                     # (B, Qp, 1) in VMEM

    # Per (batch-block, Q-tile): last key block that must be processed.  Tiles
    # containing a valid_len == 0 row process every block (reference: uniform/K).
    tiles = vl2d.reshape(n_b, block_b, n_q, block_q)
    vlmax = tiles.max(axis=(1, 3))
    vlmin = tiles.min(axis=(1, 3))
    nkb = jnp.clip((vlmax + block_k - 1) // block_k, 1, n_k)
    nkb = jnp.where(vlmin <= 0, n_k, nkb)
    last_blk = (nkb - 1).astype(jnp.int32).reshape(-1)          # (n_b * n_q,)

    def qvl_map(b, q, k, lb):
        return (b, q, 0)

    def kv_map(b, q, k, lb):
        # Clamp to the last useful block: skipped key blocks reuse the previous
        # block index, so Pallas issues no DMA for them.
        return (b, jnp.minimum(k, lb[b * n_q + q]), 0)

    grid_spec = pltpu.PrefetchScalarGridSpec(
        num_scalar_prefetch=1,
        grid=(n_b, n_q, n_k),
        in_specs=[
            pl.BlockSpec((block_b, block_q, 1), qvl_map),
            pl.BlockSpec((block_b, block_q, D), qvl_map),
            pl.BlockSpec((block_b, block_k, D), kv_map),
            pl.BlockSpec((block_b, block_k, Dv), kv_map),
        ],
        out_specs=pl.BlockSpec((block_b, block_q, Dv), qvl_map),
        scratch_shapes=[
            pltpu.VMEM((block_b, block_q, D), queries.dtype),   # scaled q
            pltpu.VMEM((block_b, block_q, 1), jnp.float32),     # running max
            pltpu.VMEM((block_b, block_q, 1), jnp.float32),     # running sum
            pltpu.VMEM((block_b, block_q, Dv), jnp.float32),    # accumulator
        ],
    )
    out = pl.pallas_call(
        _make_masked_kernel(K, Kp),
        out_shape=jax.ShapeDtypeStruct((B, Qp, Dv), out_dtype),
        grid_spec=grid_spec,
        compiler_params=pltpu.CompilerParams(
            dimension_semantics=("parallel", "parallel", "arbitrary"),
            vmem_limit_bytes=vmem_limit),
    )(last_blk, vl3d, queries, keys, values)
    return out[:, :Q, :] if Qp != Q else out


# --------------------------------- reference -----------------------------------

def _reference(queries, keys, values, valid_lens=None):
    d = queries.shape[-1]
    scores = jnp.einsum("bqd,bkd->bqk", queries, keys) / math.sqrt(d)
    if valid_lens is None:
        w = jax.nn.softmax(scores, axis=1)
    else:
        if valid_lens.ndim == 1:
            vl = valid_lens[:, None, None]
        else:
            vl = valid_lens[:, :, None]
        mask = jnp.arange(scores.shape[-1])[None, None, :] < vl
        scores = jnp.where(mask, scores, -1000000.0)
        w = jax.nn.softmax(scores, axis=-1)
    return jnp.einsum("bqk,bkv->bqv", w, values)


if __name__ == "__main__":
    key = jax.random.PRNGKey(0)

    # ---------------- small shapes (single block everywhere) ----------------
    B, Q, K, D, Dv = 2, 8, 8, 32, 32
    kq, kk, kv = jax.random.split(key, 3)
    q_s = jax.random.normal(kq, (B, Q, D), dtype=jnp.float32)
    k_s = jax.random.normal(kk, (B, K, D), dtype=jnp.float32)
    v_s = jax.random.normal(kv, (B, K, Dv), dtype=jnp.float32)

    vl1 = jnp.array([3, 6], dtype=jnp.int32)
    out = jax.block_until_ready(dot_product_attention(q_s, k_s, v_s, vl1))
    assert jnp.allclose(out, _reference(q_s, k_s, v_s, vl1),
                        atol=1e-5, rtol=1e-5), "masked (B,) small"

    vl2 = jnp.array([[1, 2, 3, 4, 5, 6, 7, 8],
                     [8, 7, 6, 5, 4, 3, 2, 1]], dtype=jnp.int32)
    out = jax.block_until_ready(dot_product_attention(q_s, k_s, v_s, vl2))
    assert jnp.allclose(out, _reference(q_s, k_s, v_s, vl2),
                        atol=1e-5, rtol=1e-5), "masked (B,Q) small"

    out = jax.block_until_ready(dot_product_attention(q_s, k_s, v_s, None))
    assert jnp.allclose(out, _reference(q_s, k_s, v_s, None),
                        atol=1e-5, rtol=1e-5), "unmasked small"

    # ------------- medium shapes: Q-tiling, K padding, block skip -------------
    B, Q, K, D, Dv = 4, 600, 650, 64, 128
    kq, kk, kv = jax.random.split(jax.random.PRNGKey(1), 3)
    q_m = jax.random.normal(kq, (B, Q, D), dtype=jnp.float32)
    k_m = jax.random.normal(kk, (B, K, D), dtype=jnp.float32)
    v_m = jax.random.normal(kv, (B, K, Dv), dtype=jnp.float32)

    # short lens -> skipped key blocks (no DMA); a 0 -> degenerate uniform row
    vl_m = jnp.array([5, 100, 0, 300], dtype=jnp.int32)
    out = jax.block_until_ready(dot_product_attention(q_m, k_m, v_m, vl_m))
    assert jnp.allclose(out, _reference(q_m, k_m, v_m, vl_m),
                        atol=2e-5, rtol=2e-5), "masked (B,) medium"

    out = jax.block_until_ready(dot_product_attention(q_m, k_m, v_m, None))
    assert jnp.allclose(out, _reference(q_m, k_m, v_m, None),
                        atol=2e-5, rtol=2e-5), "unmasked medium"

    print("KERNEL_OK")
</pallas_src>

<mosaic_0001>
module attributes {stable_mosaic.version = 11 : i64} {
  func.func @kernel(%arg0: i32, %arg1: i32, %arg2: i32, %arg3: memref<2xi32, #tpu.memory_space<smem>>, %arg4: memref<1x8x1xi32, #tpu.memory_space<vmem>>, %arg5: memref<1x8x32xf32, #tpu.memory_space<vmem>>, %arg6: memref<1x8x32xf32, #tpu.memory_space<vmem>>, %arg7: memref<1x8x32xf32, #tpu.memory_space<vmem>>, %arg8: memref<1x8x32xf32, #tpu.memory_space<vmem>>, %arg9: memref<1x8x32xf32, #tpu.memory_space<vmem>>, %arg10: memref<1x8x1xf32, #tpu.memory_space<vmem>>, %arg11: memref<1x8x1xf32, #tpu.memory_space<vmem>>, %arg12: memref<1x8x32xf32, #tpu.memory_space<vmem>>) attributes {dimension_semantics = [#tpu.dimension_semantics<parallel>, #tpu.dimension_semantics<parallel>, #tpu.dimension_semantics<arbitrary>], iteration_bounds = array<i64: 2, 1, 1>, scalar_prefetch = 1 : i64, scratch_operands = 4 : i64, tpu.core_type = #tpu.core_type<tc>, window_params = [{transform_indices = @transform_0, window_bounds = array<i64: 1, 8, 1>}, {transform_indices = @transform_1, window_bounds = array<i64: 1, 8, 32>}, {transform_indices = @transform_2, window_bounds = array<i64: 1, 8, 32>}, {transform_indices = @transform_3, window_bounds = array<i64: 1, 8, 32>}, {transform_indices = @transform_4, window_bounds = array<i64: 1, 8, 32>}]} {
    %c0_i32 = arith.constant 0 : i32
    %0 = arith.cmpi eq, %arg2, %c0_i32 : i32
    %1 = arith.extui %0 : i1 to i32
    %c0_i32_0 = arith.constant 0 : i32
    %2 = arith.cmpi ne, %1, %c0_i32_0 : i32
    scf.if %2 {
      %c0 = arith.constant 0 : index
      %c0_4 = arith.constant 0 : index
      %c0_5 = arith.constant 0 : index
      %13 = vector.load %arg5[%c0, %c0_4, %c0_5] : memref<1x8x32xf32, #tpu.memory_space<vmem>>, vector<1x8x32xf32>
      %cst = arith.constant 0.176776692 : f32
      %14 = vector.broadcast %cst : f32 to vector<1x8x32xf32>
      %15 = arith.mulf %13, %14 : vector<1x8x32xf32>
      %c0_6 = arith.constant 0 : index
      %c0_7 = arith.constant 0 : index
      %c0_8 = arith.constant 0 : index
      %16 = vector.load %arg9[%c0_6, %c0_7, %c0_8] : memref<1x8x32xf32, #tpu.memory_space<vmem>>, vector<1x8x32xf32>
      tpu.vector_store %arg9[%c0_6, %c0_7, %c0_8], %15 {strides = array<i32>} : memref<1x8x32xf32, #tpu.memory_space<vmem>>, vector<1x8x32xf32>,
      %cst_9 = arith.constant 0xFF800000 : f32
      %17 = vector.broadcast %cst_9 : f32 to vector<1x8x1xf32>
      %c0_10 = arith.constant 0 : index
      %c0_11 = arith.constant 0 : index
      %c0_12 = arith.constant 0 : index
      %18 = vector.load %arg10[%c0_10, %c0_11, %c0_12] : memref<1x8x1xf32, #tpu.memory_space<vmem>>, vector<1x8x1xf32>
      tpu.vector_store %arg10[%c0_10, %c0_11, %c0_12], %17 {strides = array<i32>} : memref<1x8x1xf32, #tpu.memory_space<vmem>>, vector<1x8x1xf32>,
      %cst_13 = arith.constant 0.000000e+00 : f32
      %19 = vector.broadcast %cst_13 : f32 to vector<1x8x1xf32>
      %c0_14 = arith.constant 0 : index
      %c0_15 = arith.constant 0 : index
      %c0_16 = arith.constant 0 : index
      %20 = vector.load %arg11[%c0_14, %c0_15, %c0_16] : memref<1x8x1xf32, #tpu.memory_space<vmem>>, vector<1x8x1xf32>
      tpu.vector_store %arg11[%c0_14, %c0_15, %c0_16], %19 {strides = array<i32>} : memref<1x8x1xf32, #tpu.memory_space<vmem>>, vector<1x8x1xf32>,
      %cst_17 = arith.constant 0.000000e+00 : f32
      %21 = vector.broadcast %cst_17 : f32 to vector<1x8x32xf32>
      %c0_18 = arith.constant 0 : index
      %c0_19 = arith.constant 0 : index
      %c0_20 = arith.constant 0 : index
      %22 = vector.load %arg12[%c0_18, %c0_19, %c0_20] : memref<1x8x32xf32, #tpu.memory_space<vmem>>, vector<1x8x32xf32>
      tpu.vector_store %arg12[%c0_18, %c0_19, %c0_20], %21 {strides = array<i32>} : memref<1x8x32xf32, #tpu.memory_space<vmem>>, vector<1x8x32xf32>,
    } else {
    }
    %c1_i32 = arith.constant 1 : i32
    %3 = arith.muli %arg0, %c1_i32 : i32
    %4 = arith.addi %3, %arg1 : i32
    %5 = arith.index_cast %4 : i32 to index
    %6 = memref.load %arg3[%5] : memref<2xi32, #tpu.memory_space<smem>>
    %7 = arith.cmpi sle, %arg2, %6 : i32
    %8 = arith.extui %7 : i1 to i32
    %c0_i32_1 = arith.constant 0 : i32
    %9 = arith.cmpi ne, %8, %c0_i32_1 : i32
    scf.if %9 {
      %c0 = arith.constant 0 : index
      %c0_4 = arith.constant 0 : index
      %c0_5 = arith.constant 0 : index
      %13 = vector.load %arg9[%c0, %c0_4, %c0_5] : memref<1x8x32xf32, #tpu.memory_space<vmem>>, vector<1x8x32xf32>
      %c0_6 = arith.constant 0 : index
      %c0_7 = arith.constant 0 : index
      %c0_8 = arith.constant 0 : index
      %14 = vector.load %arg6[%c0_6, %c0_7, %c0_8] : memref<1x8x32xf32, #tpu.memory_space<vmem>>, vector<1x8x32xf32>
      "tpu.trace_start"() <{level = 10 : i32, message = "bqd,bkd->bqk"}> : () -> ()
      %cst = arith.constant dense<0.000000e+00> : vector<1x8x8xf32>
      %15 = tpu.matmul %13, %14, %cst {dimension_numbers = #tpu.dot_dimension_numbers<[2], [2], [1], [1], [0, 0, 0, 1, 1, 1], [0], [0]>} : vector<1x8x32xf32>, vector<1x8x32xf32>, vector<1x8x8xf32> -> vector<1x8x8xf32>
      "tpu.trace_stop"() : () -> ()
      %c8_i32 = arith.constant 8 : i32
      %16 = arith.muli %arg2, %c8_i32 : i32
      %17 = tpu.iota {dimensions = array<i32: 2>} : vector<1x1x8xi32>
      %18 = vector.broadcast %16 : i32 to vector<1x1x8xi32>
      %19 = arith.addi %18, %17 : vector<1x1x8xi32>
      %c0_9 = arith.constant 0 : index
      %c0_10 = arith.constant 0 : index
      %c0_11 = arith.constant 0 : index
      %20 = vector.load %arg4[%c0_9, %c0_10, %c0_11] : memref<1x8x1xi32, #tpu.memory_space<vmem>>, vector<1x8x1xi32>
      %21 = vector.broadcast %19 : vector<1x1x8xi32> to vector<1x8x8xi32>
      %22 = vector.broadcast %20 : vector<1x8x1xi32> to vector<1x8x8xi32>
      %23 = arith.cmpi slt, %21, %22 : vector<1x8x8xi32>
      %cst_12 = arith.constant -1.000000e+06 : f32
      %24 = vector.broadcast %cst_12 : f32 to vector<1x8x8xf32>
      %25 = arith.select %23, %15, %24 : vector<1x8x8xi1>, vector<1x8x8xf32>
      %c0_13 = arith.constant 0 : index
      %c0_14 = arith.constant 0 : index
      %c0_15 = arith.constant 0 : index
      %26 = vector.load %arg10[%c0_13, %c0_14, %c0_15] : memref<1x8x1xf32, #tpu.memory_space<vmem>>, vector<1x8x1xf32>
      %cst_16 = arith.constant dense<0xFF800000> : vector<1x8xf32>
      %27 = vector.multi_reduction <maximumf>, %25, %cst_16 [2] : vector<1x8x8xf32> to vector<1x8xf32>
      %28 = vector.shape_cast %27 : vector<1x8xf32> to vector<1x8x1xf32>
      %29 = arith.maximumf %26, %28 : vector<1x8x1xf32>
      %30 = arith.subf %26, %29 : vector<1x8x1xf32>
      %31 = math.exp %30 : vector<1x8x1xf32>
      %32 = vector.broadcast %29 : vector<1x8x1xf32> to vector<1x8x8xf32>
      %33 = arith.subf %25, %32 : vector<1x8x8xf32>
      %34 = math.exp %33 : vector<1x8x8xf32>
      %c0_17 = arith.constant 0 : index
      %c0_18 = arith.constant 0 : index
      %c0_19 = arith.constant 0 : index
      %35 = vector.load %arg11[%c0_17, %c0_18, %c0_19] : memref<1x8x1xf32, #tpu.memory_space<vmem>>, vector<1x8x1xf32>
      %36 = arith.mulf %31, %35 : vector<1x8x1xf32>
      %cst_20 = arith.constant dense<0.000000e+00> : vector<1x8xf32>
      %37 = vector.multi_reduction <add>, %34, %cst_20 [2] : vector<1x8x8xf32> to vector<1x8xf32>
      %38 = vector.shape_cast %37 : vector<1x8xf32> to vector<1x8x1xf32>
      %39 = arith.addf %36, %38 : vector<1x8x1xf32>
      %c0_21 = arith.constant 0 : index
      %c0_22 = arith.constant 0 : index
      %c0_23 = arith.constant 0 : index
      %40 = vector.load %arg11[%c0_21, %c0_22, %c0_23] : memref<1x8x1xf32, #tpu.memory_space<vmem>>, vector<1x8x1xf32>
      tpu.vector_store %arg11[%c0_21, %c0_22, %c0_23], %39 {strides = array<i32>} : memref<1x8x1xf32, #tpu.memory_space<vmem>>, vector<1x8x1xf32>,
      %c0_24 = arith.constant 0 : index
      %c0_25 = arith.constant 0 : index
      %c0_26 = arith.constant 0 : index
      %41 = vector.load %arg12[%c0_24, %c0_25, %c0_26] : memref<1x8x32xf32, #tpu.memory_space<vmem>>, vector<1x8x32xf32>
      %42 = vector.broadcast %31 : vector<1x8x1xf32> to vector<1x8x32xf32>
      %43 = arith.mulf %42, %41 : vector<1x8x32xf32>
      %c0_27 = arith.constant 0 : index
      %c0_28 = arith.constant 0 : index
      %c0_29 = arith.constant 0 : index
      %44 = vector.load %arg7[%c0_27, %c0_28, %c0_29] : memref<1x8x32xf32, #tpu.memory_space<vmem>>, vector<1x8x32xf32>
      "tpu.trace_start"() <{level = 10 : i32, message = "bqk,bkv->bqv"}> : () -> ()
      %cst_30 = arith.constant dense<0.000000e+00> : vector<1x8x32xf32>
      %45 = tpu.matmul %34, %44, %cst_30 {dimension_numbers = #tpu.dot_dimension_numbers<[2], [1], [1], [2], [0, 0, 0, 1, 1, 2], [0], [0]>} : vector<1x8x8xf32>, vector<1x8x32xf32>, vector<1x8x32xf32> -> vector<1x8x32xf32>
      "tpu.trace_stop"() : () -> ()
      %46 = arith.addf %43, %45 : vector<1x8x32xf32>
      %c0_31 = arith.constant 0 : index
      %c0_32 = arith.constant 0 : index
      %c0_33 = arith.constant 0 : index
      %47 = vector.load %arg12[%c0_31, %c0_32, %c0_33] : memref<1x8x32xf32, #tpu.memory_space<vmem>>, vector<1x8x32xf32>
      tpu.vector_store %arg12[%c0_31, %c0_32, %c0_33], %46 {strides = array<i32>} : memref<1x8x32xf32, #tpu.memory_space<vmem>>, vector<1x8x32xf32>,
      %c0_34 = arith.constant 0 : index
      %c0_35 = arith.constant 0 : index
      %c0_36 = arith.constant 0 : index
      %48 = vector.load %arg10[%c0_34, %c0_35, %c0_36] : memref<1x8x1xf32, #tpu.memory_space<vmem>>, vector<1x8x1xf32>
      tpu.vector_store %arg10[%c0_34, %c0_35, %c0_36], %29 {strides = array<i32>} : memref<1x8x1xf32, #tpu.memory_space<vmem>>, vector<1x8x1xf32>,
    } else {
    }
    %c0_i32_2 = arith.constant 0 : i32
    %10 = arith.cmpi eq, %arg2, %c0_i32_2 : i32
    %11 = arith.extui %10 : i1 to i32
    %c0_i32_3 = arith.constant 0 : i32
    %12 = arith.cmpi ne, %11, %c0_i32_3 : i32
    scf.if %12 {
      %c0 = arith.constant 0 : index
      %c0_4 = arith.constant 0 : index
      %c0_5 = arith.constant 0 : index
      %13 = vector.load %arg12[%c0, %c0_4, %c0_5] : memref<1x8x32xf32, #tpu.memory_space<vmem>>, vector<1x8x32xf32>
      %c0_6 = arith.constant 0 : index
      %c0_7 = arith.constant 0 : index
      %c0_8 = arith.constant 0 : index
      %14 = vector.load %arg11[%c0_6, %c0_7, %c0_8] : memref<1x8x1xf32, #tpu.memory_space<vmem>>, vector<1x8x1xf32>
      %15 = tpu.reciprocal %14 : vector<1x8x1xf32> -> vector<1x8x1xf32>
      %16 = vector.broadcast %15 : vector<1x8x1xf32> to vector<1x8x32xf32>
      %17 = arith.mulf %13, %16 : vector<1x8x32xf32>
      %c0_9 = arith.constant 0 : index
      %c0_10 = arith.constant 0 : index
      %c0_11 = arith.constant 0 : index
      %18 = vector.load %arg8[%c0_9, %c0_10, %c0_11] : memref<1x8x32xf32, #tpu.memory_space<vmem>>, vector<1x8x32xf32>
      tpu.vector_store %arg8[%c0_9, %c0_10, %c0_11], %17 {strides = array<i32>} : memref<1x8x32xf32, #tpu.memory_space<vmem>>, vector<1x8x32xf32>,
    } else {
    }
    return
  }
  func.func @transform_0(%arg0: i32, %arg1: i32, %arg2: i32, %arg3: memref<2xi32, #tpu.memory_space<smem>>) -> (i32, i32, i32) {
    %c0_i32 = arith.constant 0 : i32
    %c0_i32_0 = arith.constant 0 : i32
    return %arg0, %arg1, %c0_i32 : i32, i32, i32
  }
  func.func @transform_1(%arg0: i32, %arg1: i32, %arg2: i32, %arg3: memref<2xi32, #tpu.memory_space<smem>>) -> (i32, i32, i32) {
    %c0_i32 = arith.constant 0 : i32
    %c0_i32_0 = arith.constant 0 : i32
    return %arg0, %arg1, %c0_i32 : i32, i32, i32
  }
  func.func @transform_2(%arg0: i32, %arg1: i32, %arg2: i32, %arg3: memref<2xi32, #tpu.memory_space<smem>>) -> (i32, i32, i32) {
    %c1_i32 = arith.constant 1 : i32
    %0 = arith.muli %arg0, %c1_i32 : i32
    %1 = arith.addi %0, %arg1 : i32
    %2 = arith.index_cast %1 : i32 to index
    %3 = memref.load %arg3[%2] : memref<2xi32, #tpu.memory_space<smem>>
    %4 = arith.minsi %arg2, %3 : i32
    %c0_i32 = arith.constant 0 : i32
    %c0_i32_0 = arith.constant 0 : i32
    return %arg0, %4, %c0_i32 : i32, i32, i32
  }
  func.func @transform_3(%arg0: i32, %arg1: i32, %arg2: i32, %arg3: memref<2xi32, #tpu.memory_space<smem>>) -> (i32, i32, i32) {
    %c1_i32 = arith.constant 1 : i32
    %0 = arith.muli %arg0, %c1_i32 : i32
    %1 = arith.addi %0, %arg1 : i32
    %2 = arith.index_cast %1 : i32 to index
    %3 = memref.load %arg3[%2] : memref<2xi32, #tpu.memory_space<smem>>
    %4 = arith.minsi %arg2, %3 : i32
    %c0_i32 = arith.constant 0 : i32
    %c0_i32_0 = arith.constant 0 : i32
    return %arg0, %4, %c0_i32 : i32, i32, i32
  }
  func.func @transform_4(%arg0: i32, %arg1: i32, %arg2: i32, %arg3: memref<2xi32, #tpu.memory_space<smem>>) -> (i32, i32, i32) {
    %c0_i32 = arith.constant 0 : i32
    %c0_i32_0 = arith.constant 0 : i32
    return %arg0, %arg1, %c0_i32 : i32, i32, i32
  }
}

</mosaic_0001>

<llo_original>
// kernel: tpu_custom_call.1
$region0: #{tpu_custom_call.1}
  #allocation0 [shape = 'u32[]', space=smem, size = 0x4, offset = 0x4, fixed_abs, tag = 'smem constant byte address 0x4 - core index']
  #allocation1 [shape = 'u32[144,128]{1,0:T(1,128)}', space=vmem, size = 0x12000, scoped, tag = 'internal scratch']
  #allocation2 [shape = 'f32[1,8,32]{2,1,0:T(8,128)}', space=vmem, size = 0x1000, scoped, tag = 'scratch operand']
  #allocation3 [shape = 'f32[1,8,1]{2,1,0:T(8,128)}', space=vmem, size = 0x1000, scoped, tag = 'scratch operand']
  #allocation4 [shape = 'f32[1,8,1]{2,1,0:T(8,128)}', space=vmem, size = 0x1000, scoped, tag = 'scratch operand']
  #allocation5 [shape = 'f32[1,8,32]{2,1,0:T(8,128)}', space=vmem, size = 0x1000, scoped, tag = 'scratch operand']
  #allocation6 [shape = 's32[1]{0}', space=sflag, size = 0x4, scoped, tag = 'scoped memory for tpu_custom_call.1']
  #allocation7 [shape = 'u8[512]{0}', space=smem, size = 0x200, scoped, tag = 'prefetched SMEM operand 0']
  %s0 = inlined_call_operand.vmem [shape: s32[2], index: 0, kind: input, shape index: {}]
  %s1 = inlined_call_operand.vmem [shape: s32[2,8,1], index: 1, kind: input, shape index: {}]
  %s2 = inlined_call_operand.vmem [shape: f32[2,8,32], index: 2, kind: input, shape index: {}]
  %s3 = inlined_call_operand.hbm [shape: f32[2,8,32], index: 3, kind: input, shape index: {}]
  %s4 = inlined_call_operand.vmem [shape: f32[2,8,32], index: 4, kind: input, shape index: {}]
  %s5 = inlined_call_operand.hbm [shape: f32[2,8,32], index: 5, kind: output, shape index: {}]
  %s6 = sld [smem:[#allocation0]]
  $region65: #{tpu_custom_call.1} parent=0
    _
  %s8 = ssub.s32 1, %s6
  %s9 = scalar_select 0, %s8, %s6
  %s10 = sshll.u32 %s0, 4
  %s11 = int_to_ptr.vmem [resolvable:$true] %s10
  %13 = dma.vmem_to_smem %s11, 16, [#allocation7], [#allocation6]
  %14 = dma.done [#allocation6], 16
  %15 = sfence
  $region1: #{tpu_custom_call.1} parent=0
    #allocation8 [shape = 'u8[8192]{0}', space=vmem, size = 0x2000, scoped, tag = 'input window, operand 3']
    #allocation9 [shape = 's32[2]{0}', space=sflag, size = 0x8, scoped, tag = 'scoped memory for tpu_custom_call.1']
    #allocation10 [shape = 's32[2]{0}', space=sflag, size = 0x8, scoped, tag = 'scoped memory for tpu_custom_call.1']
    #allocation11 [shape = 'u8[8192]{0}', space=vmem, size = 0x2000, scoped, tag = 'output window, operand 0']
    %16 = vsyncpa [#allocation9], 0
    %s17 = scalar_lea.sflag [#allocation9], 1
    %18 = vsyncpa %s17, 0
    %19 = vsyncpa [#allocation10], 0
    %s20 = scalar_lea.sflag [#allocation10], 1
    %21 = vsyncpa %s20, 0
    loop: start=0, step=1, limit=4
    $region2: #{tpu_custom_call.1} parent=1 // loop_pre_header
      _
    $region3: #{tpu_custom_call.1} parent=1 // loop_header
      %s23 = sphi 0, %s27
      %p24 = scmp.ge.s32.totalorder %s23, 4
      %s30 = sphi 0, %s49
      %s31 = sphi 0, %s45
      %s32 = sphi 0, %s41
      %s33 = sphi 0, %s30
      %s34 = sphi 0, %s31
      %s35 = sphi 0, %s32
      %s36 = sphi 0, %s33
      %s37 = sphi 0, %s34
      %s38 = sphi 0, %s35
      %s54 = sphi 0, %s56
      %s57 = sphi 0, %s54
      %s58 = sphi 0, %s57
      %s74 = sphi 0, %s58
      %s82 = sphi 0, %s84
      %s85 = sphi 0, %s82
      %s86 = sphi 0, %s85
      %s102 = sphi 0, %s86
      %s118 = sphi 0, %s120
      %s121 = sphi 0, %s118
      %s122 = sphi 0, %s121
      %s138 = sphi 0, %s122
      %s154 = sphi 0, %s156
      %s157 = sphi 0, %s154
      %s158 = sphi 0, %s157
      %s174 = sphi 0, %s158
      %s182 = sphi 0, %s184
      %s185 = sphi 0, %s182
      %s186 = sphi 0, %s185
      %s202 = sphi 0, %s186
    $region4: #{tpu_custom_call.1} parent=1 // loop_header_branch
      %26 = sbr.rel (%p24) target = $region8
    $region5: #{tpu_custom_call.1} parent=1 // loop_body
      %s28 = ssub.s32 %s23, 1
      %s29 = ssub.s32 %s23, 2
      %s39 = sadd.s32 1, %s32
      %p40 = scmp.ge.s32.totalorder %s39, 1
      %s41 = scalar_select %p40, 0, %s39
      %s42 = sadd.s32 1, %s31
      %s43 = scalar_select %p40, %s42, %s31
      %p44 = scmp.ge.s32.totalorder %s43, 1
      %s45 = scalar_select %p44, 0, %s43
      %s46 = sadd.s32 1, %s30
      %s47 = scalar_select %p44, %s46, %s30
      %p48 = scmp.ge.s32.totalorder %s47, 2
      %s49 = scalar_select %p48, 0, %s47
      %s50 = ssub.s32 %s30, %s49
      %s51 = ssub.s32 %s31, %s45
      %s52 = sor.u32 %s50, %s51
      %p53 = scmp.eq.s32.totalorder %s52, 0
      %s55 = sadd.s32 %s54, 1
      %s56 = scalar_select %p53, %s54, %s55
      %p59 = pneg %p53
      %p60 = scmp.eq.s32.totalorder %s23, 1
      %p61 = por %p59, %p60
      %p62 = scmp.ne.s32.totalorder %s54, %s57
      %p63 = scmp.eq.s32.totalorder %s23, 0
      %p64 = por %p62, %p63
      %p65 = scmp.ne.s32.totalorder %s54, %s57
      %p66 = scmp.eq.s32.totalorder %s28, 1
      %p67 = por %p65, %p66
      %p68 = scmp.ne.s32.totalorder %s57, %s58
      %p69 = scmp.eq.s32.totalorder %s28, 0
      %p70 = por %p68, %p69
      %p71 = scmp.ne.s32.totalorder %s57, %s58
      %p72 = scmp.eq.s32.totalorder %s29, 1
      %p73 = por %p71, %p72
      %p75 = scmp.ne.s32.totalorder %s58, %s74
      %p76 = scmp.eq.s32.totalorder %s29, 0
      %p77 = por %p75, %p76
      %s78 = ssub.s32 %s30, %s49
      %s79 = ssub.s32 %s31, %s45
      %s80 = sor.u32 %s78, %s79
      %p81 = scmp.eq.s32.totalorder %s80, 0
      %s83 = sadd.s32 %s82, 1
      %s84 = scalar_select %p81, %s82, %s83
      %p87 = pneg %p81
      %p88 = scmp.eq.s32.totalorder %s23, 1
      %p89 = por %p87, %p88
      %p90 = scmp.ne.s32.totalorder %s82, %s85
      %p91 = scmp.eq.s32.totalorder %s23, 0
      %p92 = por %p90, %p91
      %p93 = scmp.ne.s32.totalorder %s82, %s85
      %p94 = scmp.eq.s32.totalorder %s28, 1
      %p95 = por %p93, %p94
      %p96 = scmp.ne.s32.totalorder %s85, %s86
      %p97 = scmp.eq.s32.totalorder %s28, 0
      %p98 = por %p96, %p97
      %p99 = scmp.ne.s32.totalorder %s85, %s86
      %p100 = scmp.eq.s32.totalorder %s29, 1
      %p101 = por %p99, %p100
      %p103 = scmp.ne.s32.totalorder %s86, %s102
      %p104 = scmp.eq.s32.totalorder %s29, 0
      %p105 = por %p103, %p104
      %s106 = sadd.s32 %s30, %s31
      %s107 = sld [smem:[#allocation7 + %s106]]
      %p108 = scmp.lt.s32.totalorder %s32, %s107
      %s109 = scalar_select %p108, %s32, %s107
      %s110 = sadd.s32 %s49, %s45
      %s111 = sld [smem:[#allocation7 + %s110]]
      %p112 = scmp.lt.s32.totalorder %s41, %s111
      %s113 = scalar_select %p112, %s41, %s111
      %s114 = ssub.s32 %s30, %s49
      %s115 = ssub.s32 %s109, %s113
      %s116 = sor.u32 %s114, %s115
      %p117 = scmp.eq.s32.totalorder %s116, 0
      %s119 = sadd.s32 %s118, 1
      %s120 = scalar_select %p117, %s118, %s119
      %p123 = pneg %p117
      %p124 = scmp.eq.s32.totalorder %s23, 1
      %p125 = por %p123, %p124
      %p126 = scmp.ne.s32.totalorder %s118, %s121
      %p127 = scmp.eq.s32.totalorder %s23, 0
      %p128 = por %p126, %p127
      %p129 = scmp.ne.s32.totalorder %s118, %s121
      %p130 = scmp.eq.s32.totalorder %s28, 1
      %p131 = por %p129, %p130
      %p132 = scmp.ne.s32.totalorder %s121, %s122
      %p133 = scmp.eq.s32.totalorder %s28, 0
      %p134 = por %p132, %p133
      %p135 = scmp.ne.s32.totalorder %s121, %s122
      %p136 = scmp.eq.s32.totalorder %s29, 1
      %p137 = por %p135, %p136
      %p139 = scmp.ne.s32.totalorder %s122, %s138
      %p140 = scmp.eq.s32.totalorder %s29, 0
      %p141 = por %p139, %p140
      %s142 = sadd.s32 %s30, %s31
      %s143 = sld [smem:[#allocation7 + %s142]]
      %p144 = scmp.lt.s32.totalorder %s32, %s143
      %s145 = scalar_select %p144, %s32, %s143
      %s146 = sadd.s32 %s49, %s45
      %s147 = sld [smem:[#allocation7 + %s146]]
      %p148 = scmp.lt.s32.totalorder %s41, %s147
      %s149 = scalar_select %p148, %s41, %s147
      %s150 = ssub.s32 %s30, %s49
      %s151 = ssub.s32 %s145, %s149
      %s152 = sor.u32 %s150, %s151
      %p153 = scmp.eq.s32.totalorder %s152, 0
      %s155 = sadd.s32 %s154, 1
      %s156 = scalar_select %p153, %s154, %s155
      %p159 = pneg %p153
      %p160 = scmp.eq.s32.totalorder %s23, 1
      %p161 = por %p159, %p160
      %p162 = scmp.ne.s32.totalorder %s154, %s157
      %p163 = scmp.eq.s32.totalorder %s23, 0
      %p164 = por %p162, %p163
      %p165 = scmp.ne.s32.totalorder %s154, %s157
      %p166 = scmp.eq.s32.totalorder %s28, 1
      %p167 = por %p165, %p166
      %p168 = scmp.ne.s32.totalorder %s157, %s158
      %p169 = scmp.eq.s32.totalorder %s28, 0
      %p170 = por %p168, %p169
      %p171 = scmp.ne.s32.totalorder %s157, %s158
      %p172 = scmp.eq.s32.totalorder %s29, 1
      %p173 = por %p171, %p172
      %p175 = scmp.ne.s32.totalorder %s158, %s174
      %p176 = scmp.eq.s32.totalorder %s29, 0
      %p177 = por %p175, %p176
      %s178 = ssub.s32 %s30, %s49
      %s179 = ssub.s32 %s31, %s45
      %s180 = sor.u32 %s178, %s179
      %p181 = scmp.eq.s32.totalorder %s180, 0
      %s183 = sadd.s32 %s182, 1
      %s184 = scalar_select %p181, %s182, %s183
      %p187 = pneg %p181
      %p188 = scmp.eq.s32.totalorder %s23, 1
      %p189 = por %p187, %p188
      %p190 = scmp.ne.s32.totalorder %s182, %s185
      %p191 = scmp.eq.s32.totalorder %s23, 0
      %p192 = por %p190, %p191
      %p193 = scmp.ne.s32.totalorder %s182, %s185
      %p194 = scmp.eq.s32.totalorder %s28, 1
      %p195 = por %p193, %p194
      %p196 = scmp.ne.s32.totalorder %s185, %s186
      %p197 = scmp.eq.s32.totalorder %s28, 0
      %p198 = por %p196, %p197
      %p199 = scmp.ne.s32.totalorder %s185, %s186
      %p200 = scmp.eq.s32.totalorder %s29, 1
      %p201 = por %p199, %p200
      %p203 = scmp.ne.s32.totalorder %s186, %s202
      %p204 = scmp.eq.s32.totalorder %s29, 0
      %p205 = por %p203, %p204
      %p206 = scmp.le.s32.totalorder 1, %s23
      %p207 = scmp.lt.s32.totalorder %s23, 3
      %p208 = pnand %p206, %p207
      %p209 = pneg %p208
      // Predicated region
      $region9: #{tpu_custom_call.1} parent=5 // pred_check
        _
      $region10: #{tpu_custom_call.1} parent=5 // pred_check_branch
        %211 = sbr.rel (%p208) target = $region12
      $region11: #{tpu_custom_call.1} parent=5 // pred_region
        %s212 = ssub.s32 %s23, 1
      $region12: #{tpu_custom_call.1} parent=5 // pred_fallthru
        _
      %p213 = scmp.lt.s32.totalorder %s23, 2
      // Predicated region
      $region13: #{tpu_custom_call.1} parent=5 // pred_check
        %p214 = pneg %p213
      $region14: #{tpu_custom_call.1} parent=5 // pred_check_branch
        %216 = sbr.rel (%p214) target = $region16
      $region15: #{tpu_custom_call.1} parent=5 // pred_region
        // Predicated region
        $region17: #{tpu_custom_call.1} parent=15 // pred_check
          %p217 = pneg %p64
        $region18: #{tpu_custom_call.1} parent=15 // pred_check_branch
          %219 = sbr.rel (%p217) target = $region20
        $region19: #{tpu_custom_call.1} parent=15 // pred_region
          %p220 = scmp.lt.s32.totalorder %s30, 1
          %s221 = scalar_select %p220, %s30, 1
          %p222 = scmp.lt.s32.totalorder %s31, 0
          %s223 = scalar_select %p222, %s31, 0
          %s224 = sadd.s32 %s223, %s221
          %s225 = smul.addr %s224, 8
          %s226 = scalar_lea.vmem %s1, %s225
        $region20: #{tpu_custom_call.1} parent=15 // pred_fallthru
          _
        // Predicated region
        $region21: #{tpu_custom_call.1} parent=15 // pred_check
          %p227 = pneg %p92
        $region22: #{tpu_custom_call.1} parent=15 // pred_check_branch
          %229 = sbr.rel (%p227) target = $region24
        $region23: #{tpu_custom_call.1} parent=15 // pred_region
          %p230 = scmp.lt.s32.totalorder %s30, 1
          %s231 = scalar_select %p230, %s30, 1
          %p232 = scmp.lt.s32.totalorder %s31, 0
          %s233 = scalar_select %p232, %s31, 0
          %s234 = sadd.s32 %s233, %s231
          %s235 = smul.addr %s234, 8
          %s236 = scalar_lea.vmem %s2, %s235
        $region24: #{tpu_custom_call.1} parent=15 // pred_fallthru
          _
        // Predicated region
        $region25: #{tpu_custom_call.1} parent=15 // pred_check
          %p237 = pneg %p128
        $region26: #{tpu_custom_call.1} parent=15 // pred_check_branch
          %239 = sbr.rel (%p237) target = $region28
        $region27: #{tpu_custom_call.1} parent=15 // pred_region
          %s240 = sand.u32 %s118, 1
          %s241 = scalar_lea.sflag [#allocation9], %s240
          %s242 = sand.u32 %s118, 1
          %s243 = smul.addr %s242, 8
          %s244 = scalar_lea.vmem [#allocation8], %s243
          %s245 = sadd.s32 %s30, %s31
          %s246 = sld [smem:[#allocation7 + %s245]]
          %p247 = scmp.lt.s32.totalorder %s32, %s246
          %s248 = scalar_select %p247, %s32, %s246
          %s250 = ssub.s32 128, 128
          %251 = vsyncadd %s241, %s250
          %s252 = sadd.s32 %s248, %s30
          %s253 = smul.addr %s252, 128
          %s254 = scalar_lea.hbm %s3, %s253
          %s256 = sshll.u32 %s244, 4
          %s257 = int_to_ptr.vmem [resolvable:$true] %s256
          %259 = dma.hbm_to_vmem [thread:$0]  %s254, 128, %s257, %s241
        $region28: #{tpu_custom_call.1} parent=15 // pred_fallthru
          _
        // Predicated region
        $region29: #{tpu_custom_call.1} parent=15 // pred_check
          %p260 = pneg %p164
        $region30: #{tpu_custom_call.1} parent=15 // pred_check_branch
          %262 = sbr.rel (%p260) target = $region32
        $region31: #{tpu_custom_call.1} parent=15 // pred_region
          %s263 = sadd.s32 %s30, %s31
          %s264 = sld [smem:[#allocation7 + %s263]]
          %p265 = scmp.lt.s32.totalorder %s32, %s264
          %s266 = scalar_select %p265, %s32, %s264
          %p267 = scmp.lt.s32.totalorder %s30, 1
          %s268 = scalar_select %p267, %s30, 1
          %p269 = scmp.lt.s32.totalorder %s266, 0
          %s270 = scalar_select %p269, %s266, 0
          %s271 = sadd.s32 %s270, %s268
          %s272 = smul.addr %s271, 8
          %s273 = scalar_lea.vmem %s4, %s272
          %s274 = sadd.s32 %s30, %s31
          %s275 = sld [smem:[#allocation7 + %s274]]
          %p276 = scmp.lt.s32.totalorder %s32, %s275
          %s277 = scalar_select %p276, %s32, %s275
        $region32: #{tpu_custom_call.1} parent=15 // pred_fallthru
          _
      $region16: #{tpu_custom_call.1} parent=5 // pred_fallthru
        _
      %p278 = scmp.le.s32.totalorder 1, %s23
      %p279 = scmp.lt.s32.totalorder %s23, 3
      %p280 = pnand %p278, %p279
      %p281 = pneg %p280
      // Predicated region
      $region33: #{tpu_custom_call.1} parent=5 // pred_check
        _
      $region34: #{tpu_custom_call.1} parent=5 // pred_check_branch
        %283 = sbr.rel (%p280) target = $region36
      $region35: #{tpu_custom_call.1} parent=5 // pred_region
        %s284 = ssub.s32 %s23, 1
        %s285 = sand.u32 %s121, 1
        %s286 = scalar_lea.sflag [#allocation9], %s285
        %s287 = sand.u32 %s121, 1
        %s288 = smul.addr %s287, 8
        %s289 = scalar_lea.vmem [#allocation8], %s288
        // Predicated region
        $region37: #{tpu_custom_call.1} parent=35 // pred_check
          %p290 = pneg %p134
        $region38: #{tpu_custom_call.1} parent=35 // pred_check_branch
          %292 = sbr.rel (%p290) target = $region40
        $region39: #{tpu_custom_call.1} parent=35 // pred_region
          %293 = dma.done %s286, 128
        $region40: #{tpu_custom_call.1} parent=35 // pred_fallthru
          _
        %p294 = scmp.lt.s32.totalorder %s33, 1
        %s295 = scalar_select %p294, %s33, 1
        %p296 = scmp.lt.s32.totalorder %s34, 0
        %s297 = scalar_select %p296, %s34, 0
        %s298 = sadd.s32 %s297, %s295
        %s299 = smul.addr %s298, 8
        %s300 = scalar_lea.vmem %s1, %s299
        %p301 = pneg %p70
        %p302 = pneg %p67
        %p303 = scmp.lt.s32.totalorder %s33, 1
        %s304 = scalar_select %p303, %s33, 1
        %p305 = scmp.lt.s32.totalorder %s34, 0
        %s306 = scalar_select %p305, %s34, 0
        %s307 = sadd.s32 %s306, %s304
        %s308 = smul.addr %s307, 8
        %s309 = scalar_lea.vmem %s2, %s308
        %p310 = pneg %p98
        %p311 = pneg %p95
        %s312 = sand.u32 %s121, 1
        %s313 = scalar_lea.sflag [#allocation9], %s312
        %s314 = sand.u32 %s121, 1
        %s315 = smul.addr %s314, 8
        %s316 = scalar_lea.vmem [#allocation8], %s315
        %p317 = pneg %p134
        %p318 = pneg %p131
        %s319 = sadd.s32 %s33, %s34
        %s320 = sld [smem:[#allocation7 + %s319]]
        %p321 = scmp.lt.s32.totalorder %s35, %s320
        %s322 = scalar_select %p321, %s35, %s320
        %p323 = scmp.lt.s32.totalorder %s33, 1
        %s324 = scalar_select %p323, %s33, 1
        %p325 = scmp.lt.s32.totalorder %s322, 0
        %s326 = scalar_select %p325, %s322, 0
        %s327 = sadd.s32 %s326, %s324
        %s328 = smul.addr %s327, 8
        %s329 = scalar_lea.vmem %s4, %s328
        %p330 = pneg %p170
        %p331 = pneg %p167
        %p332 = pneg %p198
        %p333 = pneg %p195
        %s334 = sand.u32 %s185, 1
        %s335 = scalar_lea.sflag [#allocation10], %s334
        %s336 = sand.u32 %s185, 1
        %s337 = smul.addr %s336, 8
        %s338 = scalar_lea.vmem [#allocation11], %s337
        %p339 = scmp.lt.s32.totalorder %s33, 1
        %s340 = scalar_select %p339, %s33, 1
        %p341 = scmp.lt.s32.totalorder %s34, 0
        %s342 = scalar_select %p341, %s34, 0
        %s343 = sadd.s32 %s342, %s340
        %s344 = smul.addr %s343, 8
        %s345 = scalar_lea.vmem %s1, %s344
        %p346 = scmp.lt.s32.totalorder %s33, 1
        %s347 = scalar_select %p346, %s33, 1
        %p348 = scmp.lt.s32.totalorder %s34, 0
        %s349 = scalar_select %p348, %s34, 0
        %s350 = sadd.s32 %s349, %s347
        %s351 = smul.addr %s350, 8
        %s352 = scalar_lea.vmem %s2, %s351
        %s353 = sadd.s32 %s33, %s34
        %s354 = sld [smem:[#allocation7 + %s353]]
        %p355 = scmp.lt.s32.totalorder %s35, %s354
        %s356 = scalar_select %p355, %s35, %s354
        %s357 = sadd.s32 %s33, %s34
        %s358 = sld [smem:[#allocation7 + %s357]]
        %p359 = scmp.lt.s32.totalorder %s35, %s358
        %s360 = scalar_select %p359, %s35, %s358
        %p361 = scmp.lt.s32.totalorder %s33, 1
        %s362 = scalar_select %p361, %s33, 1
        %p363 = scmp.lt.s32.totalorder %s360, 0
        %s364 = scalar_select %p363, %s360, 0
        %s365 = sadd.s32 %s364, %s362
        %s366 = smul.addr %s365, 8
        %s367 = scalar_lea.vmem %s4, %s366
        %s368 = sadd.s32 %s33, %s34
        %s369 = sld [smem:[#allocation7 + %s368]]
        %p370 = scmp.lt.s32.totalorder %s35, %s369
        %s371 = scalar_select %p370, %s35, %s369
        %p372 = scmp.eq.s32.totalorder %s35, 0
        // Predicated region
        $region41: #{tpu_custom_call.1} parent=35 // pred_check
          %p373 = pneg %p372
        $region42: #{tpu_custom_call.1} parent=35 // pred_check_branch
          %375 = sbr.rel (%p373) target = $region44
        $region43: #{tpu_custom_call.1} parent=35 // pred_region
          %v376 = vld [vmem:[%s352] sm:$0xff]
          %v377 = vmul.f32 %v376, 0.17677669
          %vm378 = vcmask 261120
          %379 = vst.msk [vmem:[#allocation2] sm:$0xff] %vm378, %v377
          %vm380 = vcmask 7168
          %381 = vst.msk [vmem:[#allocation3] sm:$0xff] %vm380, -inf
          %382 = vst.msk [vmem:[#allocation4] sm:$0xff] %vm380, 0.0
          %383 = vst.msk [vmem:[#allocation5] sm:$0xff] %vm378, 0.0
        $region44: #{tpu_custom_call.1} parent=35 // pred_fallthru
          _
        %s384 = sadd.s32 %s33, %s34
        %s385 = sld [smem:[#allocation7 + %s384]]
        %p386 = scmp.le.s32.totalorder %s35, %s385
        // Predicated region
        $region45: #{tpu_custom_call.1} parent=35 // pred_check
          %p387 = pneg %p386
        $region46: #{tpu_custom_call.1} parent=35 // pred_check_branch
          %389 = sbr.rel (%p387) target = $region48
        $region47: #{tpu_custom_call.1} parent=35 // pred_region
          %v390 = vld [vmem:[#allocation2] sm:$0xff]
          %v391 = vld [vmem:[%s289] sm:$0xff]
          %vm392 = vcmask 261120
          %v394 = vsel %vm392, %v390, 0
          %v397 = vsel %vm392, %v391, 0
          %399 = vmatprep.subr.mxu0 0.0
          %400 = vmatpush1.xpose.msra.mxu0 %v397
          %401 = vmatprep.subr.mxu0 0.0
          %402 = vmatpush1.xpose.msra.mxu0 0.0
          %403 = vmatprep.subr.mxu0 0.0
          %404 = vmatpush1.xpose.msra.mxu0 0.0
          %405 = vmatprep.subr.mxu0 0.0
          %406 = vmatpush1.xpose.msra.mxu0 0.0
          %407 = vmatprep.subr.mxu0 0.0
          %408 = vmatpush1.xpose.msra.mxu0 0.0
          %409 = vmatprep.subr.mxu0 0.0
          %410 = vmatpush1.xpose.msra.mxu0 0.0
          %411 = vmatprep.subr.mxu0 0.0
          %412 = vmatpush1.xpose.msra.mxu0 0.0
          %413 = vmatprep.subr.mxu0 0.0
          %414 = vmatpush1.xpose.msra.mxu0 0.0
          %415 = vmatprep.subr.mxu0 0.0
          %416 = vmatpush1.xpose.msra.mxu0 0.0
          %417 = vmatprep.subr.mxu0 0.0
          %418 = vmatpush1.xpose.msra.mxu0 0.0
          %419 = vmatprep.subr.mxu0 0.0
          %420 = vmatpush1.xpose.msra.mxu0 0.0
          %421 = vmatprep.subr.mxu0 0.0
          %422 = vmatpush1.xpose.msra.mxu0 0.0
          %423 = vmatprep.subr.mxu0 0.0
          %424 = vmatpush1.xpose.msra.mxu0 0.0
          %425 = vmatprep.subr.mxu0 0.0
          %426 = vmatpush1.xpose.msra.mxu0 0.0
          %427 = vmatprep.subr.mxu0 0.0
          %428 = vmatpush1.xpose.msra.mxu0 0.0
          %429 = vmatprep.subr.mxu0 0.0
          %430 = vmatpush1.xpose.msra.mxu0 0.0
          %431 = vmatprep.subr.mxu0 0.0
          %432 = vmatpush1.xpose.msra.mxu0 0.0
          %433 = vmatprep.subr.mxu0 0.0
          %434 = vmatpush1.xpose.msra.mxu0 0.0
          %435 = vmatprep.subr.mxu0 0.0
          %436 = vmatpush1.xpose.msra.mxu0 0.0
          %437 = vmatprep.subr.mxu0 0.0
          %438 = vmatpush1.xpose.msra.mxu0 0.0
          %439 = vmatprep.subr.mxu0 0.0
          %440 = vmatpush1.xpose.msra.mxu0 0.0
          %441 = vmatprep.subr.mxu0 0.0
          %442 = vmatpush1.xpose.msra.mxu0 0.0
          %443 = vmatprep.subr.mxu0 0.0
          %444 = vmatpush1.xpose.msra.mxu0 0.0
          %445 = vmatprep.subr.mxu0 0.0
          %446 = vmatpush1.xpose.msra.mxu0 0.0
          %447 = vmatprep.subr.mxu0 0.0
          %448 = vmatpush1.xpose.msra.mxu0 0.0
          %449 = vmatprep.subr.mxu0 0.0
          %450 = vmatpush1.xpose.msra.mxu0 0.0
          %451 = vmatprep.subr.mxu0 0.0
          %452 = vmatpush1.xpose.msra.mxu0 0.0
          %453 = vmatprep.subr.mxu0 0.0
          %454 = vmatpush1.xpose.msra.mxu0 0.0
          %455 = vmatprep.subr.mxu0 0.0
          %456 = vmatpush1.xpose.msra.mxu0 0.0
          %457 = vmatprep.subr.mxu0 0.0
          %458 = vmatpush1.xpose.msra.mxu0 0.0
          %459 = vmatprep.subr.mxu0 0.0
          %460 = vmatpush1.xpose.msra.mxu0 0.0
          %461 = vmatprep.subr.mxu0 0.0
          %462 = vmatpush1.xpose.msra.mxu0 0.0
          %463 = vmatprep.mubr.f32.mxu0 0.0
          %464 = vmatmul.mubr.f32.gmra.mrb[0].mxu0 %v394
          %v465 = vpop.f32.mrb[0].mxu0
          %v466 = vadd.f32 0.0, %v465
          %v467 = vpop.f32.mrb[0].mxu0
          %468 = vdwg.mxu0
          %s469 = smul.u32 %s35, 8
          %v470 = vlaneseq
          %v471 = vand.u32 %v470, 127
          %v472 = vstv %s469
          %v473 = vadd.s32 %v472, %v471
          %v474 = vld [vmem:[%s345] sm:$0xff]
          %475 = vset.pattern.permute.xlu0 0
          %476 = vperm.xlu0 %475, %v474
          %v477 = vpop.permute.xlu0 %476
          %vm478 = vcmp.lt.s32.totalorder %v473, %v477
          %v479 = vsel %vm478, %v466, -1000000.0
          %v480 = vld [vmem:[#allocation3] sm:$0xff]
          %vm481 = vcmask 64512
          %v482 = vsel %vm481, %v479, -inf
          %483 = vmax.xlane.f32.xlu0 %v482
          %v484 = vpop.xlane.xlu0 %483
          %v485 = vmax.f32 %v480, %v484
          %v486 = vsub.f32 %v480, %v485
          %v487 = vmul.f32 %v486, 1.442695
          %v488 = vpow.pop %v487
          %490 = vset.pattern.permute.xlu0 0
          %491 = vperm.xlu0 %490, %v485
          %v492 = vpop.permute.xlu0 %491
          %v494 = vsub.f32 %v479, %v492
          %v495 = vmul.f32 %v494, 1.442695
          %v496 = vpow.pop %v495
          %v497 = vld [vmem:[#allocation4] sm:$0xff]
          %v498 = vmul.f32 %v488, %v497
          %v499 = vsel %vm481, %v496, 0.0
          %500 = vadd.xlane.f32.xlu0 %v499
          %v501 = vpop.xlane.xlu0 %500
          %v502 = vadd.f32 %v498, %v501
          %vm503 = vcmask 7168
          %504 = vst.msk [vmem:[#allocation4] sm:$0xff] %vm503, %v502
          %v505 = vld [vmem:[#allocation5] sm:$0xff]
          %507 = vset.pattern.permute.xlu0 0
          %508 = vperm.xlu0 %507, %v488
          %v509 = vpop.permute.xlu0 %508
          %v511 = vmul.f32 %v509, %v505
          %v512 = vld [vmem:[%s367] sm:$0xff]
          %v514 = vsel %vm481, %v496, 0
          %516 = vmatprep.subr.mxu0 0.0
          %517 = vmatpush1.msra.mxu0 %v512
          %518 = vmatprep.subr.mxu0 0.0
          %519 = vmatpush1.msra.mxu0 0.0
          %520 = vmatprep.subr.mxu0 0.0
          %521 = vmatpush1.msra.mxu0 0.0
          %522 = vmatprep.subr.mxu0 0.0
          %523 = vmatpush1.msra.mxu0 0.0
          %524 = vmatprep.subr.mxu0 0.0
          %525 = vmatpush1.msra.mxu0 0.0
          %526 = vmatprep.subr.mxu0 0.0
          %527 = vmatpush1.msra.mxu0 0.0
          %528 = vmatprep.subr.mxu0 0.0
          %529 = vmatpush1.msra.mxu0 0.0
          %530 = vmatprep.subr.mxu0 0.0
          %531 = vmatpush1.msra.mxu0 0.0
          %532 = vmatprep.subr.mxu0 0.0
          %533 = vmatpush1.msra.mxu0 0.0
          %534 = vmatprep.subr.mxu0 0.0
          %535 = vmatpush1.msra.mxu0 0.0
          %536 = vmatprep.subr.mxu0 0.0
          %537 = vmatpush1.msra.mxu0 0.0
          %538 = vmatprep.subr.mxu0 0.0
          %539 = vmatpush1.msra.mxu0 0.0
          %540 = vmatprep.subr.mxu0 0.0
          %541 = vmatpush1.msra.mxu0 0.0
          %542 = vmatprep.subr.mxu0 0.0
          %543 = vmatpush1.msra.mxu0 0.0
          %544 = vmatprep.subr.mxu0 0.0
          %545 = vmatpush1.msra.mxu0 0.0
          %546 = vmatprep.subr.mxu0 0.0
          %547 = vmatpush1.msra.mxu0 0.0
          %548 = vmatprep.subr.mxu0 0.0
          %549 = vmatpush1.msra.mxu0 0.0
          %550 = vmatprep.subr.mxu0 0.0
          %551 = vmatpush1.msra.mxu0 0.0
          %552 = vmatprep.subr.mxu0 0.0
          %553 = vmatpush1.msra.mxu0 0.0
          %554 = vmatprep.subr.mxu0 0.0
          %555 = vmatpush1.msra.mxu0 0.0
          %556 = vmatprep.subr.mxu0 0.0
          %557 = vmatpush1.msra.mxu0 0.0
          %558 = vmatprep.subr.mxu0 0.0
          %559 = vmatpush1.msra.mxu0 0.0
          %560 = vmatprep.subr.mxu0 0.0
          %561 = vmatpush1.msra.mxu0 0.0
          %562 = vmatprep.subr.mxu0 0.0
          %563 = vmatpush1.msra.mxu0 0.0
          %564 = vmatprep.subr.mxu0 0.0
          %565 = vmatpush1.msra.mxu0 0.0
          %566 = vmatprep.subr.mxu0 0.0
          %567 = vmatpush1.msra.mxu0 0.0
          %568 = vmatprep.subr.mxu0 0.0
          %569 = vmatpush1.msra.mxu0 0.0
          %570 = vmatprep.subr.mxu0 0.0
          %571 = vmatpush1.msra.mxu0 0.0
          %572 = vmatprep.subr.mxu0 0.0
          %573 = vmatpush1.msra.mxu0 0.0
          %574 = vmatprep.subr.mxu0 0.0
          %575 = vmatpush1.msra.mxu0 0.0
          %576 = vmatprep.subr.mxu0 0.0
          %577 = vmatpush1.msra.mxu0 0.0
          %578 = vmatprep.subr.mxu0 0.0
          %579 = vmatpush1.msra.mxu0 0.0
          %580 = vmatprep.mubr.f32.mxu0 0.0
          %581 = vmatmul.mubr.f32.gmra.mrb[0].mxu0 %v514
          %v582 = vpop.f32.mrb[0].mxu0
          %v583 = vadd.f32 0.0, %v582
          %v584 = vpop.f32.mrb[0].mxu0
          %585 = vdwg.mxu0
          %v586 = vadd.f32 %v511, %v583
          %587 = vst.msk [vmem:[#allocation5] sm:$0xff] %vm392, %v586
          %588 = vst.msk [vmem:[#allocation3] sm:$0xff] %vm503, %v485
        $region48: #{tpu_custom_call.1} parent=35 // pred_fallthru
          _
        // Predicated region
        $region49: #{tpu_custom_call.1} parent=35 // pred_check
          %p589 = pneg %p372
        $region50: #{tpu_custom_call.1} parent=35 // pred_check_branch
          %591 = sbr.rel (%p589) target = $region52
        $region51: #{tpu_custom_call.1} parent=35 // pred_region
          %v592 = vld [vmem:[#allocation5] sm:$0xff]
          %v593 = vld [vmem:[#allocation4] sm:$0xff]
          %v594 = vrcp.pop %v593
          %596 = vset.pattern.permute.xlu0 0
          %597 = vperm.xlu0 %596, %v594
          %v598 = vpop.permute.xlu0 %597
          %v600 = vmul.f32 %v592, %v598
          %vm601 = vcmask 261120
          %602 = vst.msk [vmem:[%s338] sm:$0xff] %vm601, %v600
        $region52: #{tpu_custom_call.1} parent=35 // pred_fallthru
          _
        %s603 = sand.u32 %s185, 1
        %s604 = scalar_lea.sflag [#allocation10], %s603
        %s605 = sand.u32 %s185, 1
        %s606 = smul.addr %s605, 8
        %s607 = scalar_lea.vmem [#allocation11], %s606
        // Predicated region
        $region53: #{tpu_custom_call.1} parent=35 // pred_check
          %p608 = pneg %p195
        $region54: #{tpu_custom_call.1} parent=35 // pred_check_branch
          %610 = sbr.rel (%p608) target = $region56
        $region55: #{tpu_custom_call.1} parent=35 // pred_region
          %s612 = ssub.s32 128, 128
          %613 = vsyncadd %s604, %s612
          %s614 = sadd.s32 %s34, %s33
          %s615 = smul.addr %s614, 128
          %s616 = scalar_lea.hbm %s5, %s615
          %s618 = sshll.u32 %s607, 4
          %s619 = int_to_ptr.vmem [resolvable:$true] %s618
          %621 = dma.vmem_to_hbm [thread:$0]  %s619, 128, %s616, %s604
        $region56: #{tpu_custom_call.1} parent=35 // pred_fallthru
          _
      $region36: #{tpu_custom_call.1} parent=5 // pred_fallthru
        _
      %p622 = scmp.le.s32.totalorder 2, %s23
      // Predicated region
      $region57: #{tpu_custom_call.1} parent=5 // pred_check
        %p623 = pneg %p622
      $region58: #{tpu_custom_call.1} parent=5 // pred_check_branch
        %625 = sbr.rel (%p623) target = $region60
      $region59: #{tpu_custom_call.1} parent=5 // pred_region
        %s626 = ssub.s32 %s23, 2
        // Predicated region
        $region61: #{tpu_custom_call.1} parent=59 // pred_check
          %p627 = pneg %p201
        $region62: #{tpu_custom_call.1} parent=59 // pred_check_branch
          %629 = sbr.rel (%p627) target = $region64
        $region63: #{tpu_custom_call.1} parent=59 // pred_region
          %s630 = sand.u32 %s186, 1
          %s631 = scalar_lea.sflag [#allocation10], %s630
          %s632 = sand.u32 %s186, 1
          %s633 = smul.addr %s632, 8
          %s634 = scalar_lea.vmem [#allocation11], %s633
          %635 = dma.done %s631, 128
        $region64: #{tpu_custom_call.1} parent=59 // pred_fallthru
          _
      $region60: #{tpu_custom_call.1} parent=5 // pred_fallthru
        _
    $region6: #{tpu_custom_call.1} parent=1 // loop_footer
      %s27 = sadd.s32 1, %s23
    $region7: #{tpu_custom_call.1} parent=1 // loop_footer_branch
      %22 = sbr.rel target = $region3
    $region8: #{tpu_custom_call.1} parent=1 // loop_exit
      _
    %636 = vsyncpa [#allocation9], 1
    %s637 = scalar_lea.sflag [#allocation9], 1
    %638 = vsyncpa %s637, 1
    %639 = vsyncpa [#allocation10], 1
    %s640 = scalar_lea.sflag [#allocation10], 1
    %641 = vsyncpa %s640, 1

</llo_original>
